<compile_context>
chip_gen: v6e
topology: v6e:2x2x1
jax: 0.10.0
libtpu: 0.0.40
codegen_flags: <defaults>
</compile_context>

<pallas_src>
import functools

import jax
import jax.numpy as jnp
from jax.experimental import pallas as pl
from jax.experimental.pallas import tpu as pltpu


def _num_tensorcores() -> int:
    """Best-effort TensorCores-per-chip query (2 on v7x, 1 on v5e/v6e)."""
    try:
        info = pltpu.get_tpu_info()
        for attr in ("num_cores", "num_tensorcores", "tensorcores_per_chip",
                     "cores_per_chip", "core_count"):
            v = getattr(info, attr, None)
            if isinstance(v, int) and v >= 1:
                return min(int(v), 2)
    except Exception:
        pass
    try:
        v = getattr(jax.devices()[0], "num_cores", None)
        if isinstance(v, int) and v >= 1:
            return min(int(v), 2)
    except Exception:
        pass
    return 1


def _fold_factor(n_rows: int, d: int) -> int:
    """Smallest k with n_rows % k == 0 and (k*d) % 128 == 0 (lane-dense view)."""
    if d >= 128:
        return 1
    for k in range(2, 513):
        if n_rows % k == 0 and (k * d) % 128 == 0:
            return k
    return 1


def _soft_hist_kernel(params_ref, x_ref, t1_out_ref, t2_out_ref,
                      acc1_ref, acc2_ref, *, n_valid_rows):
    """One (TM, Dw) tile of (possibly lane-folded) rows.

    params_ref : SMEM f32[3] = [0.5*sigma, 0.5*sigma*t1, 0.5*sigma*t2]
    x_ref      : VMEM (TM, Dw) input tile
    t?_out_ref : VMEM (1, 1, Dw) per-partition output (written once, at last i)
    acc?_ref   : VMEM (1, Dw) scratch accumulators (raw tanh column sums)
    """
    c = pl.program_id(0)                   # partition (parallel) axis
    i = pl.program_id(1)                   # reduction (arbitrary) axis
    tiles_per_part = pl.num_programs(1)

    @pl.when(i == 0)
    def _init():
        acc1_ref[...] = jnp.zeros_like(acc1_ref)
        acc2_ref[...] = jnp.zeros_like(acc2_ref)

    hs = params_ref[0]                     # 0.5 * sigma
    b1 = params_ref[1]                     # 0.5 * sigma * threshold_1
    b2 = params_ref[2]                     # 0.5 * sigma * threshold_2

    xs = x_ref[...].astype(jnp.float32) * hs          # (TM, Dw)
    t1 = jnp.tanh(xs - b1)                            # EUP
    t2 = jnp.tanh(xs - b2)                            # EUP

    tm = x_ref.shape[0]
    tile_start = (c * tiles_per_part + i) * tm        # logical first row of tile
    is_full = tile_start + tm <= n_valid_rows

    @pl.when(is_full)
    def _acc_full():                                  # common case: no mask
        acc1_ref[...] += jnp.sum(t1, axis=0, keepdims=True)
        acc2_ref[...] += jnp.sum(t2, axis=0, keepdims=True)

    @pl.when(jnp.logical_not(is_full))
    def _acc_masked():                                # ragged / out-of-range tile
        rows = tile_start + jax.lax.broadcasted_iota(jnp.int32, xs.shape, 0)
        valid = rows < n_valid_rows
        acc1_ref[...] += jnp.sum(jnp.where(valid, t1, 0.0), axis=0, keepdims=True)
        acc2_ref[...] += jnp.sum(jnp.where(valid, t2, 0.0), axis=0, keepdims=True)

    @pl.when(i == tiles_per_part - 1)
    def _finalize():                                  # single write per partition
        t1_out_ref[...] = acc1_ref[...][None]
        t2_out_ref[...] = acc2_ref[...][None]


def multi_soft_histogram(x, threshold_1, threshold_2, threshold_3,
                         sigma=500.0, tile_rows=None):
    """x: (N, D) float array -> (2*D + 1,) soft histogram (matches the torch module)."""
    # threshold_3 is stored by the PyTorch module but never used in forward().
    del threshold_3
    n, d = x.shape
    if not jnp.issubdtype(x.dtype, jnp.floating):
        x = x.astype(jnp.float32)
    # bf16 inputs are kept bf16 on the wire (HBM bound on v5e/v6e); math is f32.

    # --- lane folding: view (N, D) as (N/k, k*D) when D is lane-sparse --------
    fold = _fold_factor(n, d)
    dw = fold * d
    nf = n // fold
    xw = x.reshape(nf, dw) if fold > 1 else x   # contiguous row-major: no data movement
    itemsize = jnp.dtype(xw.dtype).itemsize

    # --- tile-size selection: ~6 MiB per input buffer, rows % 8 == 0 ----------
    if nf <= 8:
        tm = nf
    else:
        if tile_rows is None:
            tm = (6 * 1024 * 1024) // max(1, dw * itemsize)
        else:
            tm = int(tile_rows)
        tm = max(8, min(8192, (tm // 8) * 8))
        tm = min(tm, (nf // 8) * 8)

    tiles_total = -(-nf // tm)
    num_parts = max(1, min(_num_tensorcores(), tiles_total))
    tiles_per_part = -(-tiles_total // num_parts)
    last_tile = tiles_total - 1

    # Scalars live in SMEM so changing thresholds/sigma does not recompile.
    hs = 0.5 * jnp.float32(sigma)
    params = jnp.stack(
        [hs, hs * jnp.float32(threshold_1), hs * jnp.float32(threshold_2)]
    ).astype(jnp.float32)

    def x_index_map(c, i):
        # Clamp so trailing (fully-masked) grid points stay in bounds.
        return (jnp.minimum(c * tiles_per_part + i, last_tile), 0)

    cost = pl.CostEstimate(
        flops=6 * n * d,
        transcendentals=2 * n * d,
        bytes_accessed=n * d * itemsize + 2 * num_parts * dw * 4 + params.nbytes,
    )

    t1_parts, t2_parts = pl.pallas_call(
        functools.partial(_soft_hist_kernel, n_valid_rows=nf),
        out_shape=(
            jax.ShapeDtypeStruct((num_parts, 1, dw), jnp.float32),
            jax.ShapeDtypeStruct((num_parts, 1, dw), jnp.float32),
        ),
        grid=(num_parts, tiles_per_part),
        in_specs=[
            pl.BlockSpec(memory_space=pltpu.MemorySpace.SMEM),   # params
            pl.BlockSpec((tm, dw), x_index_map),
        ],
        out_specs=(
            pl.BlockSpec((1, 1, dw), lambda c, i: (c, 0, 0)),
            pl.BlockSpec((1, 1, dw), lambda c, i: (c, 0, 0)),
        ),
        scratch_shapes=[
            pltpu.VMEM((1, dw), jnp.float32),
            pltpu.VMEM((1, dw), jnp.float32),
        ],
        compiler_params=pltpu.CompilerParams(
            dimension_semantics=("parallel", "arbitrary"),
            vmem_limit_bytes=32 * 1024 * 1024,
        ),
        cost_estimate=cost,
    )(params, xw)

    # --- tiny O(D) glue: unfold lanes, affine math, closed-form low, normalize
    t1_cols = t1_parts.reshape(num_parts, fold, d).sum(axis=(0, 1))  # sum tanh(.-b1)
    t2_cols = t2_parts.reshape(num_parts, fold, d).sum(axis=(0, 1))  # sum tanh(.-b2)
    n_f = jnp.float32(n)
    high_cols = 0.5 * t1_cols + 0.5 * n_f          # == cat.sum(0)[:D]
    mid_cols = 0.5 * (t2_cols - t1_cols)           # == cat.sum(0)[D:2D]
    # sum over rows of low = N - sum(high) - sum(mid); cat.sum() == N exactly
    # (the reference computes the same denominator numerically; difference is
    #  rounding-level only).
    low_col = n_f - jnp.sum(high_cols) - jnp.sum(mid_cols)
    return jnp.concatenate([high_cols, mid_cols, low_col[None]]) / n_f


def _reference(x, t1, t2, sigma):
    x = x.astype(jnp.float32)
    s1 = jax.nn.sigmoid(sigma * (x - t1))
    s2 = jax.nn.sigmoid(sigma * (x - t2))
    high = s1
    mid = s2 - s1
    low = 1.0 - high.sum(1, keepdims=True) - mid.sum(1, keepdims=True)
    cat = jnp.concatenate([high, mid, low], axis=1)
    return cat.sum(axis=0) / cat.sum()


if __name__ == "__main__":
    threshold_1 = 0.6
    threshold_2 = 0.3
    threshold_3 = 0.1   # unused in forward (parity with the torch module)
    sigma = 500.0

    key = jax.random.PRNGKey(0)
    k1, k2, k3 = jax.random.split(key, 3)

    # Case 1: small shape consistent with the forward's (samples, bins) usage.
    # D=16 triggers lane folding (fold=8 -> lane-dense 128-wide rows).
    x1 = jax.random.uniform(k1, (8, 16), dtype=jnp.float32)
    out1 = jax.block_until_ready(
        multi_soft_histogram(x1, threshold_1, threshold_2, threshold_3, sigma))
    ref1 = _reference(x1, threshold_1, threshold_2, sigma)
    assert out1.shape == (2 * 16 + 1,)
    assert jnp.allclose(out1, ref1, atol=1e-5, rtol=1e-5)

    # Case 2: ragged row count (50 % 8 != 0) with no lane folding ->
    # exercises the in-kernel last-tile masking path (no jnp.pad copy).
    x2 = jax.random.uniform(k2, (50, 40), dtype=jnp.float32)
    out2 = jax.block_until_ready(
        multi_soft_histogram(x2, threshold_1, threshold_2, threshold_3, sigma,
                             tile_rows=8))
    ref2 = _reference(x2, threshold_1, threshold_2, sigma)
    assert out2.shape == (2 * 40 + 1,)
    assert jnp.allclose(out2, ref2, atol=1e-5, rtol=1e-5)

    # Case 3: lane folding + multi-tile resident accumulation across the grid.
    x3 = jax.random.uniform(k3, (256, 16), dtype=jnp.float32)
    out3 = jax.block_until_ready(
        multi_soft_histogram(x3, threshold_1, threshold_2, threshold_3, sigma,
                             tile_rows=8))
    ref3 = _reference(x3, threshold_1, threshold_2, sigma)
    assert out3.shape == (2 * 16 + 1,)
    assert jnp.allclose(out3, ref3, atol=1e-5, rtol=1e-5)

    print("KERNEL_OK")
</pallas_src>

<mosaic_0001>
module attributes {stable_mosaic.version = 11 : i64} {
  func.func @_soft_hist_kernel(%arg0: i32, %arg1: i32, %arg2: memref<3xf32, #tpu.memory_space<smem>>, %arg3: memref<1x128xf32, #tpu.memory_space<vmem>>, %arg4: memref<1x1x128xf32, #tpu.memory_space<vmem>>, %arg5: memref<1x1x128xf32, #tpu.memory_space<vmem>>, %arg6: memref<1x128xf32, #tpu.memory_space<vmem>>, %arg7: memref<1x128xf32, #tpu.memory_space<vmem>>) attributes {dimension_semantics = [#tpu.dimension_semantics<parallel>, #tpu.dimension_semantics<arbitrary>], iteration_bounds = array<i64: 1, 1>, scalar_prefetch = 0 : i64, scratch_operands = 2 : i64, tpu.core_type = #tpu.core_type<tc>, window_params = [{transform_indices = @transform_0, window_bounds = array<i64: 3>}, {transform_indices = @transform_1, window_bounds = array<i64: 1, 128>}, {transform_indices = @transform_2, window_bounds = array<i64: 1, 1, 128>}, {transform_indices = @transform_3, window_bounds = array<i64: 1, 1, 128>}]} {
    %c0_i32 = arith.constant 0 : i32
    %0 = arith.cmpi eq, %arg1, %c0_i32 : i32
    %1 = arith.extui %0 : i1 to i32
    %c0_i32_0 = arith.constant 0 : i32
    %2 = arith.cmpi ne, %1, %c0_i32_0 : i32
    scf.if %2 {
      %cst = arith.constant 0.000000e+00 : f32
      %28 = vector.broadcast %cst : f32 to vector<1x128xf32>
      %c0_10 = arith.constant 0 : index
      %c0_11 = arith.constant 0 : index
      %29 = vector.load %arg6[%c0_10, %c0_11] : memref<1x128xf32, #tpu.memory_space<vmem>>, vector<1x128xf32>
      tpu.vector_store %arg6[%c0_10, %c0_11], %28 {strides = array<i32>} : memref<1x128xf32, #tpu.memory_space<vmem>>, vector<1x128xf32>,
      %cst_12 = arith.constant 0.000000e+00 : f32
      %30 = vector.broadcast %cst_12 : f32 to vector<1x128xf32>
      %c0_13 = arith.constant 0 : index
      %c0_14 = arith.constant 0 : index
      %31 = vector.load %arg7[%c0_13, %c0_14] : memref<1x128xf32, #tpu.memory_space<vmem>>, vector<1x128xf32>
      tpu.vector_store %arg7[%c0_13, %c0_14], %30 {strides = array<i32>} : memref<1x128xf32, #tpu.memory_space<vmem>>, vector<1x128xf32>,
    } else {
    }
    %c0 = arith.constant 0 : index
    %3 = memref.load %arg2[%c0] : memref<3xf32, #tpu.memory_space<smem>>
    %c1 = arith.constant 1 : index
    %4 = memref.load %arg2[%c1] : memref<3xf32, #tpu.memory_space<smem>>
    %c2 = arith.constant 2 : index
    %5 = memref.load %arg2[%c2] : memref<3xf32, #tpu.memory_space<smem>>
    %c0_1 = arith.constant 0 : index
    %c0_2 = arith.constant 0 : index
    %6 = vector.load %arg3[%c0_1, %c0_2] : memref<1x128xf32, #tpu.memory_space<vmem>>, vector<1x128xf32>
    %7 = vector.broadcast %3 : f32 to vector<1x128xf32>
    %8 = arith.mulf %6, %7 : vector<1x128xf32>
    %9 = vector.broadcast %4 : f32 to vector<1x128xf32>
    %10 = arith.subf %8, %9 : vector<1x128xf32>
    %11 = math.tanh %10 : vector<1x128xf32>
    %12 = vector.broadcast %5 : f32 to vector<1x128xf32>
    %13 = arith.subf %8, %12 : vector<1x128xf32>
    %14 = math.tanh %13 : vector<1x128xf32>
    %c1_i32 = arith.constant 1 : i32
    %15 = arith.muli %arg0, %c1_i32 : i32
    %16 = arith.addi %15, %arg1 : i32
    %c1_i32_3 = arith.constant 1 : i32
    %17 = arith.muli %16, %c1_i32_3 : i32
    %c1_i32_4 = arith.constant 1 : i32
    %18 = arith.addi %17, %c1_i32_4 : i32
    %c1_i32_5 = arith.constant 1 : i32
    %19 = arith.cmpi sle, %18, %c1_i32_5 : i32
    %20 = arith.extui %19 : i1 to i32
    %c0_i32_6 = arith.constant 0 : i32
    %21 = arith.cmpi ne, %20, %c0_i32_6 : i32
    scf.if %21 {
      %c0_10 = arith.constant 0 : index
      %c0_11 = arith.constant 0 : index
      %28 = vector.load %arg6[%c0_10, %c0_11] : memref<1x128xf32, #tpu.memory_space<vmem>>, vector<1x128xf32>
      %cst = arith.constant dense<0.000000e+00> : vector<128xf32>
      %29 = vector.multi_reduction <add>, %11, %cst [0] : vector<1x128xf32> to vector<128xf32>
      %30 = vector.shape_cast %29 : vector<128xf32> to vector<1x128xf32>
      %31 = arith.addf %28, %30 : vector<1x128xf32>
      %c0_12 = arith.constant 0 : index
      %c0_13 = arith.constant 0 : index
      %32 = vector.load %arg6[%c0_12, %c0_13] : memref<1x128xf32, #tpu.memory_space<vmem>>, vector<1x128xf32>
      tpu.vector_store %arg6[%c0_12, %c0_13], %31 {strides = array<i32>} : memref<1x128xf32, #tpu.memory_space<vmem>>, vector<1x128xf32>,
      %c0_14 = arith.constant 0 : index
      %c0_15 = arith.constant 0 : index
      %33 = vector.load %arg7[%c0_14, %c0_15] : memref<1x128xf32, #tpu.memory_space<vmem>>, vector<1x128xf32>
      %cst_16 = arith.constant dense<0.000000e+00> : vector<128xf32>
      %34 = vector.multi_reduction <add>, %14, %cst_16 [0] : vector<1x128xf32> to vector<128xf32>
      %35 = vector.shape_cast %34 : vector<128xf32> to vector<1x128xf32>
      %36 = arith.addf %33, %35 : vector<1x128xf32>
      %c0_17 = arith.constant 0 : index
      %c0_18 = arith.constant 0 : index
      %37 = vector.load %arg7[%c0_17, %c0_18] : memref<1x128xf32, #tpu.memory_space<vmem>>, vector<1x128xf32>
      tpu.vector_store %arg7[%c0_17, %c0_18], %36 {strides = array<i32>} : memref<1x128xf32, #tpu.memory_space<vmem>>, vector<1x128xf32>,
    } else {
    }
    %true = arith.constant true
    %22 = arith.xori %19, %true : i1
    %23 = arith.extui %22 : i1 to i32
    %c0_i32_7 = arith.constant 0 : i32
    %24 = arith.cmpi ne, %23, %c0_i32_7 : i32
    scf.if %24 {
      %28 = tpu.iota {dimensions = array<i32: 0>} : vector<1x128xi32>
      %29 = vector.broadcast %17 : i32 to vector<1x128xi32>
      %30 = arith.addi %29, %28 : vector<1x128xi32>
      %c1_i32_10 = arith.constant 1 : i32
      %31 = vector.broadcast %c1_i32_10 : i32 to vector<1x128xi32>
      %32 = arith.cmpi slt, %30, %31 : vector<1x128xi32>
      %c0_11 = arith.constant 0 : index
      %c0_12 = arith.constant 0 : index
      %33 = vector.load %arg6[%c0_11, %c0_12] : memref<1x128xf32, #tpu.memory_space<vmem>>, vector<1x128xf32>
      %cst = arith.constant 0.000000e+00 : f32
      %34 = vector.broadcast %cst : f32 to vector<1x128xf32>
      %35 = arith.select %32, %11, %34 : vector<1x128xi1>, vector<1x128xf32>
      %cst_13 = arith.constant dense<0.000000e+00> : vector<128xf32>
      %36 = vector.multi_reduction <add>, %35, %cst_13 [0] : vector<1x128xf32> to vector<128xf32>
      %37 = vector.shape_cast %36 : vector<128xf32> to vector<1x128xf32>
      %38 = arith.addf %33, %37 : vector<1x128xf32>
      %c0_14 = arith.constant 0 : index
      %c0_15 = arith.constant 0 : index
      %39 = vector.load %arg6[%c0_14, %c0_15] : memref<1x128xf32, #tpu.memory_space<vmem>>, vector<1x128xf32>
      tpu.vector_store %arg6[%c0_14, %c0_15], %38 {strides = array<i32>} : memref<1x128xf32, #tpu.memory_space<vmem>>, vector<1x128xf32>,
      %c0_16 = arith.constant 0 : index
      %c0_17 = arith.constant 0 : index
      %40 = vector.load %arg7[%c0_16, %c0_17] : memref<1x128xf32, #tpu.memory_space<vmem>>, vector<1x128xf32>
      %cst_18 = arith.constant 0.000000e+00 : f32
      %41 = vector.broadcast %cst_18 : f32 to vector<1x128xf32>
      %42 = arith.select %32, %14, %41 : vector<1x128xi1>, vector<1x128xf32>
      %cst_19 = arith.constant dense<0.000000e+00> : vector<128xf32>
      %43 = vector.multi_reduction <add>, %42, %cst_19 [0] : vector<1x128xf32> to vector<128xf32>
      %44 = vector.shape_cast %43 : vector<128xf32> to vector<1x128xf32>
      %45 = arith.addf %40, %44 : vector<1x128xf32>
      %c0_20 = arith.constant 0 : index
      %c0_21 = arith.constant 0 : index
      %46 = vector.load %arg7[%c0_20, %c0_21] : memref<1x128xf32, #tpu.memory_space<vmem>>, vector<1x128xf32>
      tpu.vector_store %arg7[%c0_20, %c0_21], %45 {strides = array<i32>} : memref<1x128xf32, #tpu.memory_space<vmem>>, vector<1x128xf32>,
    } else {
    }
    %c0_i32_8 = arith.constant 0 : i32
    %25 = arith.cmpi eq, %arg1, %c0_i32_8 : i32
    %26 = arith.extui %25 : i1 to i32
    %c0_i32_9 = arith.constant 0 : i32
    %27 = arith.cmpi ne, %26, %c0_i32_9 : i32
    scf.if %27 {
      %c0_10 = arith.constant 0 : index
      %c0_11 = arith.constant 0 : index
      %28 = vector.load %arg6[%c0_10, %c0_11] : memref<1x128xf32, #tpu.memory_space<vmem>>, vector<1x128xf32>
      %29 = vector.shape_cast %28 : vector<1x128xf32> to vector<1x1x128xf32>
      %c0_12 = arith.constant 0 : index
      %c0_13 = arith.constant 0 : index
      %c0_14 = arith.constant 0 : index
      %30 = vector.load %arg4[%c0_12, %c0_13, %c0_14] : memref<1x1x128xf32, #tpu.memory_space<vmem>>, vector<1x1x128xf32>
      tpu.vector_store %arg4[%c0_12, %c0_13, %c0_14], %29 {strides = array<i32>} : memref<1x1x128xf32, #tpu.memory_space<vmem>>, vector<1x1x128xf32>,
      %c0_15 = arith.constant 0 : index
      %c0_16 = arith.constant 0 : index
      %31 = vector.load %arg7[%c0_15, %c0_16] : memref<1x128xf32, #tpu.memory_space<vmem>>, vector<1x128xf32>
      %32 = vector.shape_cast %31 : vector<1x128xf32> to vector<1x1x128xf32>
      %c0_17 = arith.constant 0 : index
      %c0_18 = arith.constant 0 : index
      %c0_19 = arith.constant 0 : index
      %33 = vector.load %arg5[%c0_17, %c0_18, %c0_19] : memref<1x1x128xf32, #tpu.memory_space<vmem>>, vector<1x1x128xf32>
      tpu.vector_store %arg5[%c0_17, %c0_18, %c0_19], %32 {strides = array<i32>} : memref<1x1x128xf32, #tpu.memory_space<vmem>>, vector<1x1x128xf32>,
    } else {
    }
    return
  }
  func.func @transform_0(%arg0: i32, %arg1: i32) -> i32 {
    %c0_i32 = arith.constant 0 : i32
    %c0_i32_0 = arith.constant 0 : i32
    return %c0_i32 : i32
  }
  func.func @transform_1(%arg0: i32, %arg1: i32) -> (i32, i32) {
    %c1_i32 = arith.constant 1 : i32
    %0 = arith.muli %arg0, %c1_i32 : i32
    %1 = arith.addi %0, %arg1 : i32
    %c0_i32 = arith.constant 0 : i32
    %2 = arith.minsi %1, %c0_i32 : i32
    %c0_i32_0 = arith.constant 0 : i32
    %c0_i32_1 = arith.constant 0 : i32
    return %2, %c0_i32_0 : i32, i32
  }
  func.func @transform_2(%arg0: i32, %arg1: i32) -> (i32, i32, i32) {
    %c0_i32 = arith.constant 0 : i32
    %c0_i32_0 = arith.constant 0 : i32
    %c0_i32_1 = arith.constant 0 : i32
    return %arg0, %c0_i32, %c0_i32_0 : i32, i32, i32
  }
  func.func @transform_3(%arg0: i32, %arg1: i32) -> (i32, i32, i32) {
    %c0_i32 = arith.constant 0 : i32
    %c0_i32_0 = arith.constant 0 : i32
    %c0_i32_1 = arith.constant 0 : i32
    return %arg0, %c0_i32, %c0_i32_0 : i32, i32, i32
  }
}

</mosaic_0001>

<llo_original>
// kernel: tpu_custom_call.1
$region0: #{tpu_custom_call.1}
  #allocation0 [shape = 'u32[]', space=smem, size = 0x4, offset = 0x4, fixed_abs, tag = 'smem constant byte address 0x4 - core index']
  #allocation1 [shape = 'u32[144,128]{1,0:T(1,128)}', space=vmem, size = 0x12000, scoped, tag = 'internal scratch']
  #allocation2 [shape = 'f32[1,128]{1,0:T(1,128)}', space=vmem, size = 0x200, scoped, tag = 'scratch operand']
  #allocation3 [shape = 'f32[1,128]{1,0:T(1,128)}', space=vmem, size = 0x200, scoped, tag = 'scratch operand']
  %s0 = inlined_call_operand.hbm [shape: f32[3], index: 0, kind: input, shape index: {}]
  %s1 = inlined_call_operand.vmem [shape: f32[1,128], index: 1, kind: input, shape index: {}]
  %s2 = inlined_call_operand.hbm [shape: f32[1,1,128], index: 2, kind: output, shape index: {0}]
  %s3 = inlined_call_operand.hbm [shape: f32[1,1,128], index: 3, kind: output, shape index: {1}]
  %4 = xla_tuple %s2, %s3
  %s5 = sld [smem:[#allocation0]]
  $region46: #{tpu_custom_call.1} parent=0
    _
  %s7 = ssub.s32 1, %s5
  %s8 = scalar_select 0, %s7, %s5
  $region1: #{tpu_custom_call.1} parent=0
    #allocation4 [shape = 'u8[512]{0}', space=smem, size = 0x200, scoped, tag = 'input window, operand 0, single buffered']
    #allocation5 [shape = 's32[1]{0}', space=sflag, size = 0x4, scoped, tag = 'scoped memory for tpu_custom_call.1']
    #allocation6 [shape = 's32[1]{0}', space=sflag, size = 0x4, scoped, tag = 'scoped memory for tpu_custom_call.1']
    #allocation7 [shape = 'u8[512]{0}', space=vmem, size = 0x400, scoped, tag = 'output window, operand 0, single buffered']
    #allocation8 [shape = 'u8[512]{0}', space=vmem, size = 0x400, scoped, tag = 'output window, operand 1, single buffered']
    #allocation9 [shape = 's32[1]{0}', space=sflag, size = 0x4, scoped, tag = 'scoped memory for tpu_custom_call.1']
    %9 = vsyncpa [#allocation6], 0
    %10 = vsyncpa [#allocation5], 0
    %11 = vsyncpa [#allocation9], 0
    // Predicated region
    $region2: #{tpu_custom_call.1} parent=1 // pred_check
      _
    $region3: #{tpu_custom_call.1} parent=1 // pred_check_branch
      %13 = sbr.rel (0) target = $region5
    $region4: #{tpu_custom_call.1} parent=1 // pred_region
      %s15 = ssub.s32 16, 16
      %16 = vsyncadd [#allocation6], %s15
      %19 = dma.hbm_to_smem %s0, 16, [#allocation4], [#allocation6]
    $region5: #{tpu_custom_call.1} parent=1 // pred_fallthru
      _
    // Predicated region
    $region6: #{tpu_custom_call.1} parent=1 // pred_check
      _
    $region7: #{tpu_custom_call.1} parent=1 // pred_check_branch
      %21 = sbr.rel (0) target = $region9
    $region8: #{tpu_custom_call.1} parent=1 // pred_region
      %s22 = sadd.s32 0, 0
      %p23 = scmp.lt.s32.totalorder %s22, 0
      %s24 = scalar_select %p23, %s22, 0
      %p25 = scmp.lt.s32.totalorder %s24, 0
      %s26 = scalar_select %p25, %s24, 0
      %s27 = scalar_lea.vmem %s1, %s26
      %s28 = sadd.s32 0, 0
      %p29 = scmp.lt.s32.totalorder %s28, 0
      %s30 = scalar_select %p29, %s28, 0
    $region9: #{tpu_custom_call.1} parent=1 // pred_fallthru
      _
    // Predicated region
    $region10: #{tpu_custom_call.1} parent=1 // pred_check
      _
    $region11: #{tpu_custom_call.1} parent=1 // pred_check_branch
      %32 = sbr.rel (0) target = $region13
    $region12: #{tpu_custom_call.1} parent=1 // pred_region
      %33 = dma.done [#allocation6], 16
    $region13: #{tpu_custom_call.1} parent=1 // pred_fallthru
      _
    %34 = sfence
    %s35 = sadd.s32 0, 0
    %p36 = scmp.lt.s32.totalorder %s35, 0
    %s37 = scalar_select %p36, %s35, 0
    %p38 = scmp.lt.s32.totalorder %s37, 0
    %s39 = scalar_select %p38, %s37, 0
    %s40 = scalar_lea.vmem %s1, %s39
    %s41 = sadd.s32 0, 0
    %p42 = scmp.lt.s32.totalorder %s41, 0
    %s43 = scalar_select %p42, %s41, 0
    %p44 = scmp.lt.s32.totalorder %s43, 0
    %s45 = scalar_select %p44, %s43, 0
    %s46 = scalar_lea.vmem %s1, %s45
    %s47 = sadd.s32 0, 0
    %p48 = scmp.lt.s32.totalorder %s47, 0
    %s49 = scalar_select %p48, %s47, 0
    %p50 = scmp.eq.s32.totalorder 0, 0
    // Predicated region
    $region14: #{tpu_custom_call.1} parent=1 // pred_check
      %p51 = pneg %p50
    $region15: #{tpu_custom_call.1} parent=1 // pred_check_branch
      %53 = sbr.rel (%p51) target = $region17
    $region16: #{tpu_custom_call.1} parent=1 // pred_region
      %54 = vst [vmem:[#allocation2] sm:$0x1] 0.0
      %55 = vst [vmem:[#allocation3] sm:$0x1] 0.0
    $region17: #{tpu_custom_call.1} parent=1 // pred_fallthru
      _
    %s56 = sld [smem:[#allocation4]]
    %s57 = sld [smem:[#allocation4 + $0x1]]
    %s58 = sld [smem:[#allocation4 + $0x2]]
    %v59 = vld [vmem:[%s46] sm:$0x1]
    %v60 = vstv %s56
    %v61 = vmul.f32 %v59, %v60
    %v62 = vstv %s57
    %v63 = vsub.f32 %v61, %v62
    %v64 = vtanh.pop %v63
    %v65 = vstv %s58
    %v66 = vsub.f32 %v61, %v65
    %v67 = vtanh.pop %v66
    %s68 = sadd.s32 0, 0
    %s69 = sadd.s32 %s68, 1
    %p70 = scmp.le.s32.totalorder %s69, 1
    // Predicated region
    $region18: #{tpu_custom_call.1} parent=1 // pred_check
      %p71 = pneg %p70
    $region19: #{tpu_custom_call.1} parent=1 // pred_check_branch
      %73 = sbr.rel (%p71) target = $region21
    $region20: #{tpu_custom_call.1} parent=1 // pred_region
      %v74 = vld [vmem:[#allocation2] sm:$0x1]
      %v75 = vadd.f32 %v64, 0.0
      %v76 = vadd.f32 %v74, %v75
      %77 = vst [vmem:[#allocation2] sm:$0x1] %v76
      %v78 = vld [vmem:[#allocation3] sm:$0x1]
      %v79 = vadd.f32 %v67, 0.0
      %v80 = vadd.f32 %v78, %v79
      %81 = vst [vmem:[#allocation3] sm:$0x1] %v80
    $region21: #{tpu_custom_call.1} parent=1 // pred_fallthru
      _
    %p82 = scmp.gt.s32.totalorder %s69, 1
    // Predicated region
    $region22: #{tpu_custom_call.1} parent=1 // pred_check
      %p83 = pneg %p82
    $region23: #{tpu_custom_call.1} parent=1 // pred_check_branch
      %85 = sbr.rel (%p83) target = $region25
    $region24: #{tpu_custom_call.1} parent=1 // pred_region
      %v86 = vlaneseq
      %v87 = vshrl.u32 %v86, 7
      %v88 = vstv %s68
      %v89 = vadd.s32 %v88, %v87
      %vm90 = vcmp.lt.s32.totalorder %v89, 1
      %v91 = vld [vmem:[#allocation2] sm:$0x1]
      %v92 = vsel %vm90, %v64, 0.0
      %v93 = vadd.f32 %v92, 0.0
      %v94 = vadd.f32 %v91, %v93
      %95 = vst [vmem:[#allocation2] sm:$0x1] %v94
      %v96 = vld [vmem:[#allocation3] sm:$0x1]
      %v97 = vsel %vm90, %v67, 0.0
      %v98 = vadd.f32 %v97, 0.0
      %v99 = vadd.f32 %v96, %v98
      %100 = vst [vmem:[#allocation3] sm:$0x1] %v99
    $region25: #{tpu_custom_call.1} parent=1 // pred_fallthru
      _
    // Predicated region
    $region26: #{tpu_custom_call.1} parent=1 // pred_check
      %p101 = pneg %p50
    $region27: #{tpu_custom_call.1} parent=1 // pred_check_branch
      %103 = sbr.rel (%p101) target = $region29
    $region28: #{tpu_custom_call.1} parent=1 // pred_region
      %v104 = vld [vmem:[#allocation2] sm:$0x1]
      %105 = vst [vmem:[#allocation7] sm:$0x1] %v104
      %v106 = vld [vmem:[#allocation3] sm:$0x1]
      %107 = vst [vmem:[#allocation8] sm:$0x1] %v106
    $region29: #{tpu_custom_call.1} parent=1 // pred_fallthru
      _
    // Predicated region
    $region30: #{tpu_custom_call.1} parent=1 // pred_check
      _
    $region31: #{tpu_custom_call.1} parent=1 // pred_check_branch
      %109 = sbr.rel (0) target = $region33
    $region32: #{tpu_custom_call.1} parent=1 // pred_region
      %s111 = ssub.s32 16, 16
      %112 = vsyncadd [#allocation5], %s111
      %s114 = sshll.u32 [#allocation7], 4
      %s115 = int_to_ptr.vmem [resolvable:$true] %s114
      %117 = dma.vmem_to_hbm [thread:$0]  %s115, 16, %s2, [#allocation5]
    $region33: #{tpu_custom_call.1} parent=1 // pred_fallthru
      _
    // Predicated region
    $region34: #{tpu_custom_call.1} parent=1 // pred_check
      _
    $region35: #{tpu_custom_call.1} parent=1 // pred_check_branch
      %119 = sbr.rel (0) target = $region37
    $region36: #{tpu_custom_call.1} parent=1 // pred_region
      %s121 = ssub.s32 16, 16
      %122 = vsyncadd [#allocation9], %s121
      %s124 = sshll.u32 [#allocation8], 4
      %s125 = int_to_ptr.vmem [resolvable:$true] %s124
      %127 = dma.vmem_to_hbm [thread:$0]  %s125, 16, %s3, [#allocation9]
    $region37: #{tpu_custom_call.1} parent=1 // pred_fallthru
      _
    // Predicated region
    $region38: #{tpu_custom_call.1} parent=1 // pred_check
      _
    $region39: #{tpu_custom_call.1} parent=1 // pred_check_branch
      %129 = sbr.rel (0) target = $region41
    $region40: #{tpu_custom_call.1} parent=1 // pred_region
      %130 = dma.done [#allocation5], 16
    $region41: #{tpu_custom_call.1} parent=1 // pred_fallthru
      _
    // Predicated region
    $region42: #{tpu_custom_call.1} parent=1 // pred_check
      _
    $region43: #{tpu_custom_call.1} parent=1 // pred_check_branch
      %132 = sbr.rel (0) target = $region45
    $region44: #{tpu_custom_call.1} parent=1 // pred_region
      %133 = dma.done [#allocation9], 16
    $region45: #{tpu_custom_call.1} parent=1 // pred_fallthru
      _
    %134 = vsyncpa [#allocation5], 1
    %135 = vsyncpa [#allocation9], 1
    %136 = vsyncpa [#allocation6], 1

</llo_original>
